<compile_context>
chip_gen: v7x
topology: tpu7x:2x2x1
jax: 0.10.0
libtpu: 0.0.40
codegen_flags: <defaults>
</compile_context>

<pallas_src>
import jax
import jax.numpy as jnp
from jax.experimental import pallas as pl
from jax.experimental.pallas import tpu as pltpu

_LANES = 1024            # lane-dense last dim (multiple of 128) -> unmasked vst
_TARGET_TILE_ROWS = 512  # 512 x 1024 x 4B = 2 MiB per f32 tile


def _round_up(x, m):
    return (x + m - 1) // m * m


def _make_normalize_kernel(scale, bias):
    # scale / bias are Python floats captured by closure -> compile-time consts.
    def kernel(x_ref, o_ref):
        x = x_ref[...].astype(jnp.float32)
        o_ref[...] = (x * scale - bias).astype(o_ref.dtype)
    return kernel


def normalize(x_nchw, mean, std, action_repeat):
    """Pallas implementation of Normalize.forward.

    x_nchw : (N, C, H, W) array
    mean, std, action_repeat : python scalars (as in the torch module when
    constructed with scalar mean/std).
    """
    orig_shape = x_nchw.shape
    orig_dtype = x_nchw.dtype
    itemsize = jnp.dtype(orig_dtype).itemsize

    total = int(x_nchw.size)

    # Sublane packing: second-to-last block dim must be a multiple of
    # 8 (f32) / 16 (bf16) / 32 (int8/fp8).
    sublane = 8 * max(1, 4 // itemsize)

    rows = pl.cdiv(total, _LANES)
    tm = min(_TARGET_TILE_ROWS, _round_up(rows, sublane))
    padded_rows = _round_up(rows, tm)
    padded_total = padded_rows * _LANES

    x_flat = x_nchw.reshape(-1)
    if padded_total != total:
        x_flat = jnp.pad(x_flat, (0, padded_total - total))
    x2d = x_flat.reshape(padded_rows, _LANES)

    # Fold (x / ar - mean) / std  ->  x * scale - bias
    scale = 1.0 / (float(action_repeat) * float(std))
    bias = float(mean) / float(std)
    kernel = _make_normalize_kernel(scale, bias)

    grid = (padded_rows // tm,)

    out2d = pl.pallas_call(
        kernel,
        out_shape=jax.ShapeDtypeStruct((padded_rows, _LANES), orig_dtype),
        grid=grid,
        in_specs=[pl.BlockSpec((tm, _LANES), lambda i: (i, 0))],
        out_specs=pl.BlockSpec((tm, _LANES), lambda i: (i, 0)),
        compiler_params=pltpu.CompilerParams(
            dimension_semantics=("parallel",),
        ),
        cost_estimate=pl.CostEstimate(
            flops=2 * padded_total,
            transcendentals=0,
            bytes_accessed=2 * padded_total * itemsize,
        ),
    )(x2d)

    return out2d.reshape(-1)[:total].reshape(orig_shape)


if __name__ == "__main__":
    key = jax.random.PRNGKey(0)

    # Small NCHW input: batch=2, channels=4, spatial=16x16
    N, C, H, W = 2, 4, 16, 16
    x = jax.random.normal(key, (N, C, H, W), dtype=jnp.float32) * 4.0 + 2.0

    # Deterministic "parameters" of the module (scalar mean/std, action_repeat)
    mean = 0.5
    std = 0.25
    action_repeat = 4

    out = normalize(x, mean, std, action_repeat)
    out = jax.block_until_ready(out)

    # Reference (plain JAX) check of exact forward semantics.
    # NOTE: kernel uses the folded form x*(1/(ar*std)) - mean/std; rounding
    # differs from ((x/ar - mean)/std) by at most a few ulps in f32.
    ref = (x / action_repeat - mean) / std
    assert out.shape == x.shape
    assert out.dtype == x.dtype
    assert jnp.allclose(out, ref, atol=1e-5, rtol=1e-5), "mismatch vs reference"

    print("KERNEL_OK")
</pallas_src>

<mosaic_0001>
module attributes {stable_mosaic.version = 11 : i64} {
  func.func @kernel(%arg0: i32, %arg1: memref<8x1024xf32, #tpu.memory_space<vmem>>, %arg2: memref<8x1024xf32, #tpu.memory_space<vmem>>) attributes {dimension_semantics = [#tpu.dimension_semantics<parallel>], iteration_bounds = array<i64: 1>, scalar_prefetch = 0 : i64, scratch_operands = 0 : i64, tpu.core_type = #tpu.core_type<tc>, window_params = [{transform_indices = @transform_0, window_bounds = array<i64: 8, 1024>}, {transform_indices = @transform_1, window_bounds = array<i64: 8, 1024>}]} {
    %c0 = arith.constant 0 : index
    %c0_0 = arith.constant 0 : index
    %0 = vector.load %arg1[%c0, %c0_0] : memref<8x1024xf32, #tpu.memory_space<vmem>>, vector<8x1024xf32>
    %cst = arith.constant 1.000000e+00 : f32
    %1 = vector.broadcast %cst : f32 to vector<8x1024xf32>
    %2 = arith.mulf %0, %1 : vector<8x1024xf32>
    %cst_1 = arith.constant 2.000000e+00 : f32
    %3 = vector.broadcast %cst_1 : f32 to vector<8x1024xf32>
    %4 = arith.subf %2, %3 : vector<8x1024xf32>
    %c0_2 = arith.constant 0 : index
    %c0_3 = arith.constant 0 : index
    %5 = vector.load %arg2[%c0_2, %c0_3] : memref<8x1024xf32, #tpu.memory_space<vmem>>, vector<8x1024xf32>
    tpu.vector_store %arg2[%c0_2, %c0_3], %4 {strides = array<i32>} : memref<8x1024xf32, #tpu.memory_space<vmem>>, vector<8x1024xf32>,
    return
  }
  func.func @transform_0(%arg0: i32) -> (i32, i32) {
    %c0_i32 = arith.constant 0 : i32
    %c0_i32_0 = arith.constant 0 : i32
    return %arg0, %c0_i32 : i32, i32
  }
  func.func @transform_1(%arg0: i32) -> (i32, i32) {
    %c0_i32 = arith.constant 0 : i32
    %c0_i32_0 = arith.constant 0 : i32
    return %arg0, %c0_i32 : i32, i32
  }
}

</mosaic_0001>

<llo_original>
// kernel: tpu_custom_call.1
$region0: #{tpu_custom_call.1}
  #allocation0 [shape = 'u32[]', space=smem, size = 0x4, offset = 0x4, fixed_abs, tag = 'smem constant byte address 0x4 - core index']
  #allocation1 [shape = 'u32[144,128]{1,0:T(1,128)}', space=vmem, size = 0x12000, scoped, tag = 'internal scratch']
  %s0 = inlined_call_operand.hbm [shape: f32[8,1024], index: 0, kind: input, shape index: {}]
  %s1 = inlined_call_operand.hbm [shape: f32[8,1024], index: 1, kind: output, shape index: {}]
  %s2 = sld [smem:[#allocation0]]
  $region18: #{tpu_custom_call.1} parent=0
    _
  %s4 = ssub.s32 1, %s2
  %s5 = scalar_select 0, %s4, %s2
  $region1: #{tpu_custom_call.1} parent=0
    #allocation2 [shape = 'u8[32768]{0}', space=vmem, size = 0x8000, scoped, tag = 'input window, operand 0, single buffered']
    #allocation3 [shape = 's32[1]{0}', space=sflag, size = 0x4, scoped, tag = 'scoped memory for tpu_custom_call.1']
    #allocation4 [shape = 's32[1]{0}', space=sflag, size = 0x4, scoped, tag = 'scoped memory for tpu_custom_call.1']
    #allocation5 [shape = 'u8[32768]{0}', space=vmem, size = 0x8000, scoped, tag = 'output window, operand 0, single buffered']
    %6 = vsyncpa [#allocation3], 0
    %7 = vsyncpa [#allocation4], 0
    // Predicated region
    $region2: #{tpu_custom_call.1} parent=1 // pred_check
      _
    $region3: #{tpu_custom_call.1} parent=1 // pred_check_branch
      %9 = sbr.rel (0) target = $region5
    $region4: #{tpu_custom_call.1} parent=1 // pred_region
      %s11 = ssub.s32 1024, 1024
      %12 = vsyncadd [#allocation3], %s11
      %s14 = sshll.u32 [#allocation2], 4
      %s15 = int_to_ptr.vmem [resolvable:$true] %s14
      %17 = dma.hbm_to_vmem [thread:$0]  %s0, 1024, %s15, [#allocation3]
    $region5: #{tpu_custom_call.1} parent=1 // pred_fallthru
      _
    // Predicated region
    $region6: #{tpu_custom_call.1} parent=1 // pred_check
      _
    $region7: #{tpu_custom_call.1} parent=1 // pred_check_branch
      %19 = sbr.rel (0) target = $region9
    $region8: #{tpu_custom_call.1} parent=1 // pred_region
      %20 = dma.done [#allocation3], 1024
    $region9: #{tpu_custom_call.1} parent=1 // pred_fallthru
      _
    %v21 = vld [vmem:[#allocation2] sm:$0xff]
    %v22 = vld [vmem:[#allocation2 + $0x8] sm:$0xff]
    %v23 = vld [vmem:[#allocation2 + $0x10] sm:$0xff]
    %v24 = vld [vmem:[#allocation2 + $0x18] sm:$0xff]
    %v25 = vld [vmem:[#allocation2 + $0x20] sm:$0xff]
    %v26 = vld [vmem:[#allocation2 + $0x28] sm:$0xff]
    %v27 = vld [vmem:[#allocation2 + $0x30] sm:$0xff]
    %v28 = vld [vmem:[#allocation2 + $0x38] sm:$0xff]
    %v29 = vsub.f32 %v21, 2.0
    %v30 = vsub.f32 %v22, 2.0
    %v31 = vsub.f32 %v23, 2.0
    %v32 = vsub.f32 %v24, 2.0
    %v33 = vsub.f32 %v25, 2.0
    %v34 = vsub.f32 %v26, 2.0
    %v35 = vsub.f32 %v27, 2.0
    %v36 = vsub.f32 %v28, 2.0
    %37 = vst [vmem:[#allocation5] sm:$0xff] %v29
    %38 = vst [vmem:[#allocation5 + $0x8] sm:$0xff] %v30
    %39 = vst [vmem:[#allocation5 + $0x10] sm:$0xff] %v31
    %40 = vst [vmem:[#allocation5 + $0x18] sm:$0xff] %v32
    %41 = vst [vmem:[#allocation5 + $0x20] sm:$0xff] %v33
    %42 = vst [vmem:[#allocation5 + $0x28] sm:$0xff] %v34
    %43 = vst [vmem:[#allocation5 + $0x30] sm:$0xff] %v35
    %44 = vst [vmem:[#allocation5 + $0x38] sm:$0xff] %v36
    // Predicated region
    $region10: #{tpu_custom_call.1} parent=1 // pred_check
      _
    $region11: #{tpu_custom_call.1} parent=1 // pred_check_branch
      %46 = sbr.rel (0) target = $region13
    $region12: #{tpu_custom_call.1} parent=1 // pred_region
      %s48 = ssub.s32 1024, 1024
      %49 = vsyncadd [#allocation4], %s48
      %s51 = sshll.u32 [#allocation5], 4
      %s52 = int_to_ptr.vmem [resolvable:$true] %s51
      %54 = dma.vmem_to_hbm [thread:$0]  %s52, 1024, %s1, [#allocation4]
    $region13: #{tpu_custom_call.1} parent=1 // pred_fallthru
      _
    // Predicated region
    $region14: #{tpu_custom_call.1} parent=1 // pred_check
      _
    $region15: #{tpu_custom_call.1} parent=1 // pred_check_branch
      %56 = sbr.rel (0) target = $region17
    $region16: #{tpu_custom_call.1} parent=1 // pred_region
      %57 = dma.done [#allocation4], 1024
    $region17: #{tpu_custom_call.1} parent=1 // pred_fallthru
      _
    %58 = vsyncpa [#allocation3], 1
    %59 = vsyncpa [#allocation4], 1

</llo_original>
